<compile_context>
chip_gen: v7x
topology: tpu7x:2x2x1
jax: 0.10.0
libtpu: 0.0.40
codegen_flags: <defaults>
</compile_context>

<pallas_src>
import jax
import jax.numpy as jnp
from jax import lax
from jax.experimental import pallas as pl
from jax.experimental.pallas import tpu as pltpu

L1_OUT = 32
L2_OUT = 16
L3_OUT = 2


def _qawali_kernel(x_ref, w1_ref, b1_ref, w2_ref, b2_ref, w3_ref, b3_ref, out_ref):
    # x_ref: (tm, feat) f32 tile of the LAST time-step rows (seq dim squeezed by the
    # BlockSpec).  Cast to the compute dtype only right before the MXU dot.
    xb = x_ref[...].astype(w1_ref.dtype)

    # h1 = W1 @ x^T -> (L1_OUT, tm): batch lives on the 128-wide lane axis.
    h1 = lax.dot_general(
        w1_ref[...], xb, (((1,), (1,)), ((), ())),
        preferred_element_type=jnp.float32,
    ) + b1_ref[...]
    h1 = jnp.maximum(h1, 0.0)                                   # f32 (L1_OUT, tm)

    h2 = jnp.dot(
        w2_ref[...], h1.astype(w2_ref.dtype),
        preferred_element_type=jnp.float32,
    ) + b2_ref[...]
    h2 = jnp.maximum(h2, 0.0)                                   # f32 (L2_OUT, tm)

    h3 = jnp.dot(
        w3_ref[...], h2.astype(w3_ref.dtype),
        preferred_element_type=jnp.float32,
    ) + b3_ref[...]
    h3 = jnp.maximum(h3, 0.0)                                   # f32 (2, tm)

    # Numerically stable 2-class log_softmax, algebraic form (no reductions):
    #   log p0 = -softplus(h1 - h0),  log p1 = -softplus(h0 - h1)
    d = h3[1:2, :] - h3[0:1, :]                                 # (1, tm)
    sp_pos = jnp.maximum(d, 0.0) + jnp.log(1.0 + jnp.exp(-jnp.abs(d)))  # softplus(d)
    sp_neg = sp_pos - d                                         # softplus(-d)
    out_ref[...] = jnp.concatenate([-sp_pos, -sp_neg], axis=0).astype(out_ref.dtype)


def _choose_row_tile(m, target=4096):
    """Rows (batch) per grid step; batch sits on the lane axis in the kernel."""
    if m <= 512:
        # Single full-array block: sidesteps the 128-lane block constraint and
        # needs no pipelining for tiny batches.
        return m
    # Lane-dense tiles: multiple of 128, capped at `target`, and at most ~m/2 so the
    # "parallel" batch axis has >= 2 grid steps (v7x megacore).  At feat <= 64 the
    # per-step x tile stays ~0.25-1 MB, far under v7x's 64 MiB VMEM.
    half = (m // 2) // 128 * 128
    return max(128, min(target, half))


def qawali_forward(x, params, *, compute_dtype=jnp.bfloat16, row_tile=4096):
    """x: (seq, batch, numFeatures) float32. Returns (batch, 2) float32 log-probs."""
    seq, batch, feat = x.shape
    w1, b1, w2, b2, w3, b3 = params         # W: (out, in), b: (out,)  (nn.Linear shapes)

    # Weights/biases are tiny: cast/reshape here (O(weights), not O(batch)).
    # x itself is passed untouched — the BlockSpec reads the last time-step straight
    # from the original HBM slab (no slice/cast materialized by XLA).
    w1c, w2c, w3c = (w.astype(compute_dtype) for w in (w1, w2, w3))
    b1c, b2c, b3c = (b.reshape(-1, 1).astype(jnp.float32) for b in (b1, b2, b3))

    m = batch
    tm = _choose_row_tile(m, row_tile)
    grid = (pl.cdiv(m, tm),)                # masked last tile if tm does not divide m

    in_specs = [
        # Last time-step only, tm batch rows per step (seq dim squeezed).
        pl.BlockSpec((None, tm, feat), lambda i: (seq - 1, i, 0)),
        # Weights / biases: replicated constant-index blocks (stay resident in VMEM).
        pl.BlockSpec((L1_OUT, feat), lambda i: (0, 0)),
        pl.BlockSpec((L1_OUT, 1), lambda i: (0, 0)),
        pl.BlockSpec((L2_OUT, L1_OUT), lambda i: (0, 0)),
        pl.BlockSpec((L2_OUT, 1), lambda i: (0, 0)),
        pl.BlockSpec((L3_OUT, L2_OUT), lambda i: (0, 0)),
        pl.BlockSpec((L3_OUT, 1), lambda i: (0, 0)),
    ]
    # Lane-dense (2, tm) output blocks (unmasked stores); wrapper transposes at the end.
    out_spec = pl.BlockSpec((L3_OUT, tm), lambda i: (0, i))

    flops = 2 * m * (feat * L1_OUT + L1_OUT * L2_OUT + L2_OUT * L3_OUT)
    bytes_accessed = int(
        m * feat * x.dtype.itemsize                               # x[-1] read once, f32
        + sum(a.size * a.dtype.itemsize for a in (w1c, b1c, w2c, b2c, w3c, b3c))
        + m * L3_OUT * 4                                          # output
    )
    cost = pl.CostEstimate(
        flops=flops, transcendentals=2 * m, bytes_accessed=bytes_accessed
    )

    out_t = pl.pallas_call(
        _qawali_kernel,
        out_shape=jax.ShapeDtypeStruct((L3_OUT, m), jnp.float32),
        grid=grid,
        in_specs=in_specs,
        out_specs=out_spec,
        cost_estimate=cost,
        compiler_params=pltpu.CompilerParams(dimension_semantics=("parallel",)),
    )(x, w1c, b1c, w2c, b2c, w3c, b3c)

    return out_t.T                          # (batch, 2) log-probs, as in the PyTorch module


def init_params(num_features, key):
    """nn.Linear-style init: W (out, in), b (out,), U(-1/sqrt(fan_in), +1/sqrt(fan_in))."""
    def linear(k, fan_in, fan_out):
        kw, kb = jax.random.split(k)
        bound = float(fan_in) ** -0.5
        w = jax.random.uniform(kw, (fan_out, fan_in), jnp.float32, -bound, bound)
        b = jax.random.uniform(kb, (fan_out,), jnp.float32, -bound, bound)
        return w, b

    k1, k2, k3 = jax.random.split(key, 3)
    w1, b1 = linear(k1, num_features, L1_OUT)
    w2, b2 = linear(k2, L1_OUT, L2_OUT)
    w3, b3 = linear(k3, L2_OUT, L3_OUT)
    return (w1, b1, w2, b2, w3, b3)


def reference_forward(x, params, compute_dtype=jnp.bfloat16):
    """Plain-JAX reference mirroring the PyTorch forward with the same bf16/f32 mix."""
    w1, b1, w2, b2, w3, b3 = params

    def layer(h, w, b):
        y = jnp.dot(h.astype(compute_dtype), w.T.astype(compute_dtype),
                    preferred_element_type=jnp.float32) + b
        return jnp.maximum(y, 0.0)

    h1 = layer(x[-1], w1, b1)
    h2 = layer(h1, w2, b2)
    h3 = layer(h2, w3, b3)
    return jax.nn.log_softmax(h3, axis=1)


if __name__ == "__main__":
    key = jax.random.PRNGKey(0)
    kx, kp, kx2 = jax.random.split(key, 3)

    # Small shapes consistent with the module.
    seq, batch, num_features = 8, 2, 16
    x = jax.random.normal(kx, (seq, batch, num_features), jnp.float32)
    params = init_params(num_features, kp)

    y = jax.block_until_ready(qawali_forward(x, params))
    y_ref = reference_forward(x, params)
    assert y.shape == (batch, L3_OUT)
    assert jnp.allclose(y, y_ref, atol=1e-3, rtol=1e-3), (y, y_ref)

    # Also exercise the tiled path (grid > 1, lane-aligned tiles, masked last block).
    batch2 = 640
    x2 = jax.random.normal(kx2, (seq, batch2, num_features), jnp.float32)
    y2 = jax.block_until_ready(qawali_forward(x2, params))
    y2_ref = reference_forward(x2, params)
    assert y2.shape == (batch2, L3_OUT)
    assert jnp.allclose(y2, y2_ref, atol=1e-3, rtol=1e-3)

    print("KERNEL_OK")
</pallas_src>

<mosaic_0001>
module attributes {stable_mosaic.version = 11 : i64} {
  func.func @_qawali_kernel(%arg0: i32, %arg1: memref<1x2x16xf32, #tpu.memory_space<vmem>>, %arg2: memref<32x16xbf16, #tpu.memory_space<vmem>>, %arg3: memref<32x1xf32, #tpu.memory_space<vmem>>, %arg4: memref<16x32xbf16, #tpu.memory_space<vmem>>, %arg5: memref<16x1xf32, #tpu.memory_space<vmem>>, %arg6: memref<2x16xbf16, #tpu.memory_space<vmem>>, %arg7: memref<2x1xf32, #tpu.memory_space<vmem>>, %arg8: memref<2x2xf32, #tpu.memory_space<vmem>>) attributes {dimension_semantics = [#tpu.dimension_semantics<parallel>], iteration_bounds = array<i64: 1>, scalar_prefetch = 0 : i64, scratch_operands = 0 : i64, tpu.core_type = #tpu.core_type<tc>, window_params = [{transform_indices = @transform_0, window_bounds = array<i64: 1, 2, 16>}, {pipeline_mode = #tpu.pipeline_mode<synchronous>, transform_indices = @transform_1, window_bounds = array<i64: 32, 16>}, {pipeline_mode = #tpu.pipeline_mode<synchronous>, transform_indices = @transform_2, window_bounds = array<i64: 32, 1>}, {pipeline_mode = #tpu.pipeline_mode<synchronous>, transform_indices = @transform_3, window_bounds = array<i64: 16, 32>}, {pipeline_mode = #tpu.pipeline_mode<synchronous>, transform_indices = @transform_4, window_bounds = array<i64: 16, 1>}, {pipeline_mode = #tpu.pipeline_mode<synchronous>, transform_indices = @transform_5, window_bounds = array<i64: 2, 16>}, {pipeline_mode = #tpu.pipeline_mode<synchronous>, transform_indices = @transform_6, window_bounds = array<i64: 2, 1>}, {transform_indices = @transform_7, window_bounds = array<i64: 2, 2>}]} {
    %c0 = arith.constant 0 : index
    %c0_0 = arith.constant 0 : index
    %c0_1 = arith.constant 0 : index
    %0 = vector.load %arg1[%c0, %c0_0, %c0_1] : memref<1x2x16xf32, #tpu.memory_space<vmem>>, vector<1x2x16xf32>
    %1 = vector.shape_cast %0 : vector<1x2x16xf32> to vector<2x16xf32>
    %2 = arith.truncf %1 : vector<2x16xf32> to vector<2x16xbf16>
    %c0_2 = arith.constant 0 : index
    %c0_3 = arith.constant 0 : index
    %3 = vector.load %arg2[%c0_2, %c0_3] : memref<32x16xbf16, #tpu.memory_space<vmem>>, vector<32x16xbf16>
    %cst = arith.constant dense<0.000000e+00> : vector<32x2xf32>
    %4 = tpu.matmul %3, %2, %cst {dimension_numbers = #tpu.dot_dimension_numbers<[1], [1], [0], [0], [0, 0, 1, 0], [], []>} : vector<32x16xbf16>, vector<2x16xbf16>, vector<32x2xf32> -> vector<32x2xf32>
    %c0_4 = arith.constant 0 : index
    %c0_5 = arith.constant 0 : index
    %5 = vector.load %arg3[%c0_4, %c0_5] : memref<32x1xf32, #tpu.memory_space<vmem>>, vector<32x1xf32>
    %6 = vector.broadcast %5 : vector<32x1xf32> to vector<32x2xf32>
    %7 = arith.addf %4, %6 : vector<32x2xf32>
    %cst_6 = arith.constant 0.000000e+00 : f32
    %8 = vector.broadcast %cst_6 : f32 to vector<32x2xf32>
    %9 = arith.maximumf %7, %8 : vector<32x2xf32>
    %c0_7 = arith.constant 0 : index
    %c0_8 = arith.constant 0 : index
    %10 = vector.load %arg4[%c0_7, %c0_8] : memref<16x32xbf16, #tpu.memory_space<vmem>>, vector<16x32xbf16>
    %11 = arith.truncf %9 : vector<32x2xf32> to vector<32x2xbf16>
    %cst_9 = arith.constant dense<0.000000e+00> : vector<16x2xf32>
    %12 = tpu.matmul %10, %11, %cst_9 {dimension_numbers = #tpu.dot_dimension_numbers<[1], [0], [0], [1], [0, 0, 1, 1], [], []>} : vector<16x32xbf16>, vector<32x2xbf16>, vector<16x2xf32> -> vector<16x2xf32>
    %c0_10 = arith.constant 0 : index
    %c0_11 = arith.constant 0 : index
    %13 = vector.load %arg5[%c0_10, %c0_11] : memref<16x1xf32, #tpu.memory_space<vmem>>, vector<16x1xf32>
    %14 = vector.broadcast %13 : vector<16x1xf32> to vector<16x2xf32>
    %15 = arith.addf %12, %14 : vector<16x2xf32>
    %cst_12 = arith.constant 0.000000e+00 : f32
    %16 = vector.broadcast %cst_12 : f32 to vector<16x2xf32>
    %17 = arith.maximumf %15, %16 : vector<16x2xf32>
    %c0_13 = arith.constant 0 : index
    %c0_14 = arith.constant 0 : index
    %18 = vector.load %arg6[%c0_13, %c0_14] : memref<2x16xbf16, #tpu.memory_space<vmem>>, vector<2x16xbf16>
    %19 = arith.truncf %17 : vector<16x2xf32> to vector<16x2xbf16>
    %cst_15 = arith.constant dense<0.000000e+00> : vector<2x2xf32>
    %20 = tpu.matmul %18, %19, %cst_15 {dimension_numbers = #tpu.dot_dimension_numbers<[1], [0], [0], [1], [0, 0, 1, 1], [], []>} : vector<2x16xbf16>, vector<16x2xbf16>, vector<2x2xf32> -> vector<2x2xf32>
    %c0_16 = arith.constant 0 : index
    %c0_17 = arith.constant 0 : index
    %21 = vector.load %arg7[%c0_16, %c0_17] : memref<2x1xf32, #tpu.memory_space<vmem>>, vector<2x1xf32>
    %22 = vector.broadcast %21 : vector<2x1xf32> to vector<2x2xf32>
    %23 = arith.addf %20, %22 : vector<2x2xf32>
    %cst_18 = arith.constant 0.000000e+00 : f32
    %24 = vector.broadcast %cst_18 : f32 to vector<2x2xf32>
    %25 = arith.maximumf %23, %24 : vector<2x2xf32>
    %26 = vector.extract_strided_slice %25 {offsets = [1, 0], sizes = [1, 2], strides = [1, 1]} : vector<2x2xf32> to vector<1x2xf32>
    %27 = vector.extract_strided_slice %25 {offsets = [0, 0], sizes = [1, 2], strides = [1, 1]} : vector<2x2xf32> to vector<1x2xf32>
    %28 = arith.subf %26, %27 : vector<1x2xf32>
    %cst_19 = arith.constant 0.000000e+00 : f32
    %29 = vector.broadcast %cst_19 : f32 to vector<1x2xf32>
    %30 = arith.maximumf %28, %29 : vector<1x2xf32>
    %31 = math.absf %28 : vector<1x2xf32>
    %cst_20 = arith.constant 0.000000e+00 : f32
    %32 = vector.broadcast %cst_20 : f32 to vector<1x2xf32>
    %33 = arith.subf %32, %31 : vector<1x2xf32>
    %34 = math.exp %33 : vector<1x2xf32>
    %cst_21 = arith.constant 1.000000e+00 : f32
    %35 = vector.broadcast %cst_21 : f32 to vector<1x2xf32>
    %36 = arith.addf %35, %34 : vector<1x2xf32>
    %37 = math.log %36 : vector<1x2xf32>
    %38 = arith.addf %30, %37 : vector<1x2xf32>
    %39 = arith.subf %38, %28 : vector<1x2xf32>
    %cst_22 = arith.constant 0.000000e+00 : f32
    %40 = vector.broadcast %cst_22 : f32 to vector<1x2xf32>
    %41 = arith.subf %40, %38 : vector<1x2xf32>
    %cst_23 = arith.constant 0.000000e+00 : f32
    %42 = vector.broadcast %cst_23 : f32 to vector<1x2xf32>
    %43 = arith.subf %42, %39 : vector<1x2xf32>
    %44 = tpu.concatenate %41, %43 in 0 : vector<1x2xf32>, vector<1x2xf32> -> vector<2x2xf32>
    %c0_24 = arith.constant 0 : index
    %c0_25 = arith.constant 0 : index
    %45 = vector.load %arg8[%c0_24, %c0_25] : memref<2x2xf32, #tpu.memory_space<vmem>>, vector<2x2xf32>
    tpu.vector_store %arg8[%c0_24, %c0_25], %44 {strides = array<i32>} : memref<2x2xf32, #tpu.memory_space<vmem>>, vector<2x2xf32>,
    return
  }
  func.func @transform_0(%arg0: i32) -> (i32, i32, i32) {
    %c7_i32 = arith.constant 7 : i32
    %c0_i32 = arith.constant 0 : i32
    %c0_i32_0 = arith.constant 0 : i32
    return %c7_i32, %arg0, %c0_i32 : i32, i32, i32
  }
  func.func @transform_1(%arg0: i32) -> (i32, i32) {
    %c0_i32 = arith.constant 0 : i32
    %c0_i32_0 = arith.constant 0 : i32
    %c0_i32_1 = arith.constant 0 : i32
    return %c0_i32, %c0_i32_0 : i32, i32
  }
  func.func @transform_2(%arg0: i32) -> (i32, i32) {
    %c0_i32 = arith.constant 0 : i32
    %c0_i32_0 = arith.constant 0 : i32
    %c0_i32_1 = arith.constant 0 : i32
    return %c0_i32, %c0_i32_0 : i32, i32
  }
  func.func @transform_3(%arg0: i32) -> (i32, i32) {
    %c0_i32 = arith.constant 0 : i32
    %c0_i32_0 = arith.constant 0 : i32
    %c0_i32_1 = arith.constant 0 : i32
    return %c0_i32, %c0_i32_0 : i32, i32
  }
  func.func @transform_4(%arg0: i32) -> (i32, i32) {
    %c0_i32 = arith.constant 0 : i32
    %c0_i32_0 = arith.constant 0 : i32
    %c0_i32_1 = arith.constant 0 : i32
    return %c0_i32, %c0_i32_0 : i32, i32
  }
  func.func @transform_5(%arg0: i32) -> (i32, i32) {
    %c0_i32 = arith.constant 0 : i32
    %c0_i32_0 = arith.constant 0 : i32
    %c0_i32_1 = arith.constant 0 : i32
    return %c0_i32, %c0_i32_0 : i32, i32
  }
  func.func @transform_6(%arg0: i32) -> (i32, i32) {
    %c0_i32 = arith.constant 0 : i32
    %c0_i32_0 = arith.constant 0 : i32
    %c0_i32_1 = arith.constant 0 : i32
    return %c0_i32, %c0_i32_0 : i32, i32
  }
  func.func @transform_7(%arg0: i32) -> (i32, i32) {
    %c0_i32 = arith.constant 0 : i32
    %c0_i32_0 = arith.constant 0 : i32
    return %c0_i32, %arg0 : i32, i32
  }
}

</mosaic_0001>

<llo_original>
// kernel: tpu_custom_call.1
$region0: #{tpu_custom_call.1}
  #allocation0 [shape = 'u32[]', space=smem, size = 0x4, offset = 0x4, fixed_abs, tag = 'smem constant byte address 0x4 - core index']
  #allocation1 [shape = 'u32[144,128]{1,0:T(1,128)}', space=vmem, size = 0x12000, scoped, tag = 'internal scratch']
  %s0 = inlined_call_operand.vmem [shape: f32[8,2,16], index: 0, kind: input, shape index: {}]
  %s1 = inlined_call_operand.vmem [shape: bf16[32,16], index: 1, kind: input, shape index: {}]
  %s2 = inlined_call_operand.vmem [shape: f32[32,1], index: 2, kind: input, shape index: {}]
  %s3 = inlined_call_operand.vmem [shape: bf16[16,32], index: 3, kind: input, shape index: {}]
  %s4 = inlined_call_operand.vmem [shape: f32[16,1], index: 4, kind: input, shape index: {}]
  %s5 = inlined_call_operand.vmem [shape: bf16[2,16], index: 5, kind: input, shape index: {}]
  %s6 = inlined_call_operand.vmem [shape: f32[2,1], index: 6, kind: input, shape index: {}]
  %s7 = inlined_call_operand.hbm [shape: f32[2,2], index: 7, kind: output, shape index: {}]
  %s8 = sld [smem:[#allocation0]]
  $region38: #{tpu_custom_call.1} parent=0
    _
  %s10 = ssub.s32 1, %s8
  %s11 = scalar_select 0, %s10, %s8
  $region1: #{tpu_custom_call.1} parent=0
    #allocation2 [shape = 'u8[1024]{0}', space=vmem, size = 0x400, scoped, tag = 'output window, operand 0, single buffered']
    #allocation3 [shape = 's32[1]{0}', space=sflag, size = 0x4, scoped, tag = 'scoped memory for tpu_custom_call.1']
    %12 = vsyncpa [#allocation3], 0
    // Predicated region
    $region2: #{tpu_custom_call.1} parent=1 // pred_check
      _
    $region3: #{tpu_custom_call.1} parent=1 // pred_check_branch
      %14 = sbr.rel (0) target = $region5
    $region4: #{tpu_custom_call.1} parent=1 // pred_region
      %s15 = scalar_lea.vmem %s0, 14
    $region5: #{tpu_custom_call.1} parent=1 // pred_fallthru
      _
    // Predicated region
    $region6: #{tpu_custom_call.1} parent=1 // pred_check
      _
    $region7: #{tpu_custom_call.1} parent=1 // pred_check_branch
      %17 = sbr.rel (0) target = $region9
    $region8: #{tpu_custom_call.1} parent=1 // pred_region
      _
    $region9: #{tpu_custom_call.1} parent=1 // pred_fallthru
      _
    // Predicated region
    $region10: #{tpu_custom_call.1} parent=1 // pred_check
      _
    $region11: #{tpu_custom_call.1} parent=1 // pred_check_branch
      %19 = sbr.rel (0) target = $region13
    $region12: #{tpu_custom_call.1} parent=1 // pred_region
      _
    $region13: #{tpu_custom_call.1} parent=1 // pred_fallthru
      _
    // Predicated region
    $region14: #{tpu_custom_call.1} parent=1 // pred_check
      _
    $region15: #{tpu_custom_call.1} parent=1 // pred_check_branch
      %21 = sbr.rel (0) target = $region17
    $region16: #{tpu_custom_call.1} parent=1 // pred_region
      _
    $region17: #{tpu_custom_call.1} parent=1 // pred_fallthru
      _
    // Predicated region
    $region18: #{tpu_custom_call.1} parent=1 // pred_check
      _
    $region19: #{tpu_custom_call.1} parent=1 // pred_check_branch
      %23 = sbr.rel (0) target = $region21
    $region20: #{tpu_custom_call.1} parent=1 // pred_region
      _
    $region21: #{tpu_custom_call.1} parent=1 // pred_fallthru
      _
    // Predicated region
    $region22: #{tpu_custom_call.1} parent=1 // pred_check
      _
    $region23: #{tpu_custom_call.1} parent=1 // pred_check_branch
      %25 = sbr.rel (0) target = $region25
    $region24: #{tpu_custom_call.1} parent=1 // pred_region
      _
    $region25: #{tpu_custom_call.1} parent=1 // pred_fallthru
      _
    // Predicated region
    $region26: #{tpu_custom_call.1} parent=1 // pred_check
      _
    $region27: #{tpu_custom_call.1} parent=1 // pred_check_branch
      %27 = sbr.rel (0) target = $region29
    $region28: #{tpu_custom_call.1} parent=1 // pred_region
      _
    $region29: #{tpu_custom_call.1} parent=1 // pred_fallthru
      _
    %s28 = scalar_lea.vmem %s0, 14
    %s29 = scalar_lea.vmem %s0, 14
    %v31 = vld [vmem:[%s29] sm:$0x3]
    %v32 = vpack.c.bf16 %v31, %v31
    %v33 = vld [vmem:[%s1] sm:$0xf]
    %v34 = vld [vmem:[%s1 + $0x4] sm:$0xf]
    %v35 = vld [vmem:[%s1 + $0x8] sm:$0xf]
    %v36 = vld [vmem:[%s1 + $0xc] sm:$0xf]
    %v37 = vld [vmem:[%s2] sm:$0xff]
    %v38 = vld [vmem:[%s2 + $0x8] sm:$0xff]
    %v39 = vld [vmem:[%s2 + $0x10] sm:$0xff]
    %v40 = vld [vmem:[%s2 + $0x18] sm:$0xff]
    %42 = vset.pattern.permute.xlu0 0
    %43 = vperm.xlu0 %42, %v37
    %v44 = vpop.permute.xlu0 %43
    %47 = vset.pattern.permute.xlu0 0
    %48 = vperm.xlu0 %47, %v38
    %v49 = vpop.permute.xlu0 %48
    %52 = vset.pattern.permute.xlu0 0
    %53 = vperm.xlu0 %52, %v39
    %v54 = vpop.permute.xlu0 %53
    %57 = vset.pattern.permute.xlu0 0
    %58 = vperm.xlu0 %57, %v40
    %v59 = vpop.permute.xlu0 %58
    %v65 = vunpack.c.l.b16 %v33
    %v66 = vunpack.c.l.b16 %v34
    %v67 = vunpack.c.l.b16 %v35
    %v68 = vunpack.c.l.b16 %v36
    %v69 = vpack.c.b16 %v66, %v65
    %v70 = vpack.c.b16 %v68, %v67
    %vm71 = vcmask 130048
    %v73 = vsel %vm71, %v69, 0
    %v76 = vsel %vm71, %v70, 0
    %v79 = vsel %vm71, %v32, 0
    %81 = vmatprep.subr.bf16.mxu0 0
    %82 = vmatpush1.bf16.xpose.msra.mxu0 %v79
    %83 = vmatprep.subr.bf16.mxu0 0
    %84 = vmatpush1.bf16.xpose.msra.mxu0 0
    %85 = vmatprep.subr.bf16.mxu0 0
    %86 = vmatpush1.bf16.xpose.msra.mxu0 0
    %87 = vmatprep.subr.bf16.mxu0 0
    %88 = vmatpush1.bf16.xpose.msra.mxu0 0
    %89 = vmatprep.subr.bf16.mxu0 0
    %90 = vmatpush1.bf16.xpose.msra.mxu0 0
    %91 = vmatprep.subr.bf16.mxu0 0
    %92 = vmatpush1.bf16.xpose.msra.mxu0 0
    %93 = vmatprep.subr.bf16.mxu0 0
    %94 = vmatpush1.bf16.xpose.msra.mxu0 0
    %95 = vmatprep.subr.bf16.mxu0 0
    %96 = vmatpush1.bf16.xpose.msra.mxu0 0
    %97 = vmatprep.subr.bf16.mxu0 0
    %98 = vmatpush1.bf16.xpose.msra.mxu0 0
    %99 = vmatprep.subr.bf16.mxu0 0
    %100 = vmatpush1.bf16.xpose.msra.mxu0 0
    %101 = vmatprep.subr.bf16.mxu0 0
    %102 = vmatpush1.bf16.xpose.msra.mxu0 0
    %103 = vmatprep.subr.bf16.mxu0 0
    %104 = vmatpush1.bf16.xpose.msra.mxu0 0
    %105 = vmatprep.subr.bf16.mxu0 0
    %106 = vmatpush1.bf16.xpose.msra.mxu0 0
    %107 = vmatprep.subr.bf16.mxu0 0
    %108 = vmatpush1.bf16.xpose.msra.mxu0 0
    %109 = vmatprep.subr.bf16.mxu0 0
    %110 = vmatpush1.bf16.xpose.msra.mxu0 0
    %111 = vmatprep.subr.bf16.mxu0 0
    %112 = vmatpush1.bf16.xpose.msra.mxu0 0
    %113 = vmatprep.mubr.bf16.mxu0 0
    %114 = vmatmul.mubr.bf16.gmra.mrb[0].mxu0 %v73
    %v115 = vpop.f32.mrb[0].mxu0
    %v116 = vadd.f32 %v44, %v115
    %v117 = vpop.f32.mrb[0].mxu0
    %v118 = vpop.f32.mrb[0].mxu0
    %v119 = vadd.f32 %v49, %v118
    %v120 = vpop.f32.mrb[0].mxu0
    %121 = vmatprep.mubr.bf16.mxu0 0
    %122 = vmatmul.mubr.bf16.gmra.mrb[0].mxu0 %v76
    %v123 = vpop.f32.mrb[0].mxu0
    %v124 = vadd.f32 %v54, %v123
    %v125 = vpop.f32.mrb[0].mxu0
    %v126 = vpop.f32.mrb[0].mxu0
    %v127 = vadd.f32 %v59, %v126
    %v128 = vpop.f32.mrb[0].mxu0
    %129 = vdwg.mxu0
    %v130 = vmax.f32 %v116, 0.0
    %v131 = vmax.f32 %v119, 0.0
    %v132 = vmax.f32 %v124, 0.0
    %v133 = vmax.f32 %v127, 0.0
    %v134 = vld [vmem:[%s3] sm:$0xf]
    %v135 = vld [vmem:[%s3 + $0x4] sm:$0xf]
    %v136 = vpack.c.bf16 %v131, %v130
    %v137 = vpack.c.bf16 %v133, %v132
    %v138 = vld [vmem:[%s4] sm:$0xff]
    %v139 = vld [vmem:[%s4 + $0x8] sm:$0xff]
    %141 = vset.pattern.permute.xlu0 0
    %142 = vperm.xlu0 %141, %v138
    %v143 = vpop.permute.xlu0 %142
    %146 = vset.pattern.permute.xlu0 0
    %147 = vperm.xlu0 %146, %v139
    %v148 = vpop.permute.xlu0 %147
    %v152 = vunpack.c.l.b16 %v134
    %v153 = vunpack.c.l.b16 %v135
    %v154 = vpack.c.b16 %v153, %v152
    %vm155 = vcmask 261120
    %v157 = vsel %vm155, %v154, 0
    %159 = vmatprep.subr.bf16.mxu0 0
    %160 = vmatpush1.bf16.msra.mxu0 %v136
    %161 = vmatprep.subr.bf16.mxu0 0
    %162 = vmatpush1.bf16.msra.mxu0 %v137
    %163 = vmatprep.subr.bf16.mxu0 0
    %164 = vmatpush1.bf16.msra.mxu0 0
    %165 = vmatprep.subr.bf16.mxu0 0
    %166 = vmatpush1.bf16.msra.mxu0 0
    %167 = vmatprep.subr.bf16.mxu0 0
    %168 = vmatpush1.bf16.msra.mxu0 0
    %169 = vmatprep.subr.bf16.mxu0 0
    %170 = vmatpush1.bf16.msra.mxu0 0
    %171 = vmatprep.subr.bf16.mxu0 0
    %172 = vmatpush1.bf16.msra.mxu0 0
    %173 = vmatprep.subr.bf16.mxu0 0
    %174 = vmatpush1.bf16.msra.mxu0 0
    %175 = vmatprep.subr.bf16.mxu0 0
    %176 = vmatpush1.bf16.msra.mxu0 0
    %177 = vmatprep.subr.bf16.mxu0 0
    %178 = vmatpush1.bf16.msra.mxu0 0
    %179 = vmatprep.subr.bf16.mxu0 0
    %180 = vmatpush1.bf16.msra.mxu0 0
    %181 = vmatprep.subr.bf16.mxu0 0
    %182 = vmatpush1.bf16.msra.mxu0 0
    %183 = vmatprep.subr.bf16.mxu0 0
    %184 = vmatpush1.bf16.msra.mxu0 0
    %185 = vmatprep.subr.bf16.mxu0 0
    %186 = vmatpush1.bf16.msra.mxu0 0
    %187 = vmatprep.subr.bf16.mxu0 0
    %188 = vmatpush1.bf16.msra.mxu0 0
    %189 = vmatprep.subr.bf16.mxu0 0
    %190 = vmatpush1.bf16.msra.mxu0 0
    %191 = vmatprep.mubr.bf16.mxu0 0
    %192 = vmatmul.mubr.bf16.gmra.mrb[0].mxu0 %v157
    %v193 = vpop.f32.mrb[0].mxu0
    %v194 = vadd.f32 %v143, %v193
    %v195 = vpop.f32.mrb[0].mxu0
    %v196 = vpop.f32.mrb[0].mxu0
    %v197 = vadd.f32 %v148, %v196
    %v198 = vpop.f32.mrb[0].mxu0
    %199 = vdwg.mxu0
    %v200 = vmax.f32 %v194, 0.0
    %v201 = vmax.f32 %v197, 0.0
    %v202 = vld [vmem:[%s5] sm:$0x1]
    %v203 = vpack.c.bf16 %v201, %v200
    %v204 = vld [vmem:[%s6] sm:$0x3]
    %206 = vset.pattern.permute.xlu0 0
    %207 = vperm.xlu0 %206, %v204
    %v208 = vpop.permute.xlu0 %207
    %v211 = vsel %vm71, %v202, 0
    %213 = vmatprep.subr.bf16.mxu0 0
    %214 = vmatpush1.bf16.msra.mxu0 %v203
    %215 = vmatprep.subr.bf16.mxu0 0
    %216 = vmatpush1.bf16.msra.mxu0 0
    %217 = vmatprep.subr.bf16.mxu0 0
    %218 = vmatpush1.bf16.msra.mxu0 0
    %219 = vmatprep.subr.bf16.mxu0 0
    %220 = vmatpush1.bf16.msra.mxu0 0
    %221 = vmatprep.subr.bf16.mxu0 0
    %222 = vmatpush1.bf16.msra.mxu0 0
    %223 = vmatprep.subr.bf16.mxu0 0
    %224 = vmatpush1.bf16.msra.mxu0 0
    %225 = vmatprep.subr.bf16.mxu0 0
    %226 = vmatpush1.bf16.msra.mxu0 0
    %227 = vmatprep.subr.bf16.mxu0 0
    %228 = vmatpush1.bf16.msra.mxu0 0
    %229 = vmatprep.subr.bf16.mxu0 0
    %230 = vmatpush1.bf16.msra.mxu0 0
    %231 = vmatprep.subr.bf16.mxu0 0
    %232 = vmatpush1.bf16.msra.mxu0 0
    %233 = vmatprep.subr.bf16.mxu0 0
    %234 = vmatpush1.bf16.msra.mxu0 0
    %235 = vmatprep.subr.bf16.mxu0 0
    %236 = vmatpush1.bf16.msra.mxu0 0
    %237 = vmatprep.subr.bf16.mxu0 0
    %238 = vmatpush1.bf16.msra.mxu0 0
    %239 = vmatprep.subr.bf16.mxu0 0
    %240 = vmatpush1.bf16.msra.mxu0 0
    %241 = vmatprep.subr.bf16.mxu0 0
    %242 = vmatpush1.bf16.msra.mxu0 0
    %243 = vmatprep.subr.bf16.mxu0 0
    %244 = vmatpush1.bf16.msra.mxu0 0
    %245 = vmatprep.mubr.bf16.mxu0 0
    %246 = vmatmul.mubr.bf16.gmra.mrb[0].mxu0 %v211
    %v247 = vpop.f32.mrb[0].mxu0
    %v248 = vadd.f32 %v208, %v247
    %v249 = vpop.f32.mrb[0].mxu0
    %v250 = vpop.f32.mrb[0].mxu0
    %v251 = vpop.f32.mrb[0].mxu0
    %252 = vdwg.mxu0
    %v253 = vmax.f32 %v248, 0.0
    %v255 = vrot.slane %v253, 7
    %v257 = vsub.f32 %v253, %v255
    %v258 = vmax.f32 %v257, 0.0
    %v259 = vand.u32 2147483647, %v257
    %v260 = vsub.f32 0.0, %v259
    %v261 = vmul.f32 %v260, 1.442695
    %v262 = vpow.pop %v261
    %v263 = vadd.f32 %v262, 1.0
    %v264 = vlog2.pop %v263
    %v265 = vmul.f32 %v264, 0.6931472
    %v266 = vadd.f32 %v258, %v265
    %v267 = vsub.f32 %v266, %v257
    %v268 = vsub.f32 0.0, %v266
    %v269 = vsub.f32 0.0, %v267
    %v271 = vrot.slane %v268, 1
    %vm273 = vcmask 1040384
    %v274 = vsel %vm273, %v271, %v269
    %vm275 = vcmask 9216
    %276 = vst.msk [vmem:[#allocation2] sm:$0x3] %vm275, %v274
    // Predicated region
    $region30: #{tpu_custom_call.1} parent=1 // pred_check
      _
    $region31: #{tpu_custom_call.1} parent=1 // pred_check_branch
      %278 = sbr.rel (0) target = $region33
    $region32: #{tpu_custom_call.1} parent=1 // pred_region
      %s280 = ssub.s32 32, 32
      %281 = vsyncadd [#allocation3], %s280
      %s283 = sshll.u32 [#allocation2], 4
      %s284 = int_to_ptr.vmem [resolvable:$true] %s283
      %286 = dma.vmem_to_hbm [thread:$0]  %s284, 32, %s7, [#allocation3]
    $region33: #{tpu_custom_call.1} parent=1 // pred_fallthru
      _
    // Predicated region
    $region34: #{tpu_custom_call.1} parent=1 // pred_check
      _
    $region35: #{tpu_custom_call.1} parent=1 // pred_check_branch
      %288 = sbr.rel (0) target = $region37
    $region36: #{tpu_custom_call.1} parent=1 // pred_region
      %289 = dma.done [#allocation3], 32
    $region37: #{tpu_custom_call.1} parent=1 // pred_fallthru
      _
    %290 = vsyncpa [#allocation3], 1

</llo_original>
